<compile_context>
chip_gen: v7x
topology: tpu7x:2x2x1
jax: 0.10.0
libtpu: 0.0.40
codegen_flags: <defaults>
</compile_context>

<pallas_src>
import functools
import math

import jax
import jax.numpy as jnp
from jax.experimental import pallas as pl
from jax.experimental.pallas import tpu as pltpu

_VMEM_LIMIT = 48 * 1024 * 1024   # explicit scoped-VMEM limit; safe on v5e/v6e (128 MiB) and v7x (64 MiB)
_NEG_BIG = -9e15                 # same mask value as the PyTorch reference


def _project_kernel(x_ref, w_ref, a_dst_ref, h_ref, v_ref):
    """h = x @ W[head] (bf16 MXU, f32 accum) and v[j] = h_j . a_dst[head] (lane-major)."""
    x = x_ref[...].astype(jnp.bfloat16)
    w = w_ref[0].astype(jnp.bfloat16)
    h = jnp.dot(x, w, preferred_element_type=jnp.float32)          # (TM, F_out) f32
    h_ref[0] = h
    # Key-side attention score, stored along lanes so the attention kernel can add it
    # straight across a (TM, TN) tile (no per-tile transpose, no K=1 MXU broadcast).
    v_ref[...] = jnp.sum(h * a_dst_ref[0], axis=-1).reshape(v_ref.shape)


def _attn_kernel(hq_ref, hk_ref, vrow_ref, adj_ref, a_src_ref, o_ref,
                 m_sc, l_sc, acc_sc, *, alpha, apply_elu, apply_log_softmax):
    ki = pl.program_id(2)

    @pl.when(ki == 0)
    def _():
        m_sc[...] = jnp.full(m_sc.shape, -jnp.inf, dtype=jnp.float32)
        l_sc[...] = jnp.zeros(l_sc.shape, dtype=jnp.float32)
        acc_sc[...] = jnp.zeros(acc_sc.shape, dtype=jnp.float32)

    h_q = hq_ref[0]                                    # (TM, F) f32, query rows
    h_k = hk_ref[0]                                    # (TN, F) f32, key rows
    a_src = a_src_ref[0]                               # (1, F)
    v_row = vrow_ref[0]                                # (1, TN) precomputed h_j . a_dst
    adj = adj_ref[...]                                 # (TM, TN) int8 mask

    # e_ij = LeakyReLU(u_i + v_j) — VPU multiply + row reduce, no width-1 matmuls.
    u = jnp.sum(h_q * a_src, axis=-1, keepdims=True)   # (TM, 1)
    e = u + v_row                                      # (TM, TN)
    e = jnp.where(e >= 0.0, e, alpha * e)
    logits = jnp.where(adj > 0, e, _NEG_BIG)           # scalar fill, no full_like temp

    # Online softmax update (statistics in f32).
    m_prev = m_sc[...]
    m_new = jnp.maximum(m_prev, jnp.max(logits, axis=-1, keepdims=True))
    corr = jnp.exp(m_prev - m_new)
    p = jnp.exp(logits - m_new)                        # (TM, TN)
    l_sc[...] = corr * l_sc[...] + jnp.sum(p, axis=-1, keepdims=True)
    acc_sc[...] = corr * acc_sc[...] + jnp.dot(
        p.astype(jnp.bfloat16), h_k.astype(jnp.bfloat16),
        preferred_element_type=jnp.float32)
    m_sc[...] = m_new

    @pl.when(ki == pl.num_programs(2) - 1)
    def _():
        # attn @ h; the per-row 1/l factor cancels exactly through LayerNorm, so the
        # approximate EUP reciprocal costs nothing numerically.
        hp = acc_sc[...] * pl.reciprocal(l_sc[...], approx=True)    # (TM, F)
        mu = jnp.mean(hp, axis=-1, keepdims=True)
        var = jnp.mean((hp - mu) ** 2, axis=-1, keepdims=True)
        out = (hp - mu) * jax.lax.rsqrt(var + 1e-5)                 # LayerNorm (weight=1, bias=0)
        if apply_elu:
            out = jnp.where(out > 0.0, out, jnp.exp(jnp.minimum(out, 0.0)) - 1.0)
        if apply_log_softmax:
            mx = jnp.max(out, axis=-1, keepdims=True)
            z = out - mx
            out = z - jnp.log(jnp.sum(jnp.exp(z), axis=-1, keepdims=True))
        o_ref[0] = out.astype(o_ref.dtype)


def gat_layer_heads(x, adj_i8, w_stack, a_src, a_dst, *, alpha,
                    apply_elu, apply_log_softmax, tm=128, tn=128):
    """All heads of one GraphAttentionLayer as two fused, tiled pallas_calls.

    x:           (N_pad, F_in) float32         (N_pad multiple of tm and tn)
    adj_i8:      (N_pad, N_pad) int8 mask
    w_stack:     (H, F_in, F_out)
    a_src/a_dst: (H, 1, F_out)
    returns:     (H, N_pad, F_out) float32
    """
    n_pad, f_in = x.shape
    heads, _, f_out = w_stack.shape
    assert n_pad % tm == 0 and n_pad % tn == 0

    # Phase 1: h = x @ W, computed once per layer and reused by every (qi, ki) tile.
    h, v = pl.pallas_call(
        _project_kernel,
        out_shape=(jax.ShapeDtypeStruct((heads, n_pad, f_out), jnp.float32),
                   jax.ShapeDtypeStruct((heads, 1, n_pad), jnp.float32)),
        grid_spec=pltpu.PrefetchScalarGridSpec(
            num_scalar_prefetch=0,
            grid=(heads, n_pad // tm),
            in_specs=[pl.BlockSpec((tm, f_in), lambda hh, i: (i, 0)),
                      pl.BlockSpec((1, f_in, f_out), lambda hh, i: (hh, 0, 0)),
                      pl.BlockSpec((1, 1, f_out), lambda hh, i: (hh, 0, 0))],
            out_specs=[pl.BlockSpec((1, tm, f_out), lambda hh, i: (hh, i, 0)),
                       pl.BlockSpec((1, 1, tm), lambda hh, i: (hh, 0, i))]),
        compiler_params=pltpu.CompilerParams(
            dimension_semantics=("parallel", "parallel"),
            vmem_limit_bytes=_VMEM_LIMIT),
    )(x, w_stack, a_dst)

    # Phase 2: online-softmax attention + attn@h + LayerNorm (+ELU, +log_softmax).
    kernel = functools.partial(_attn_kernel, alpha=alpha,
                               apply_elu=apply_elu,
                               apply_log_softmax=apply_log_softmax)
    out = pl.pallas_call(
        kernel,
        out_shape=jax.ShapeDtypeStruct((heads, n_pad, f_out), jnp.float32),
        grid_spec=pltpu.PrefetchScalarGridSpec(
            num_scalar_prefetch=0,
            grid=(heads, n_pad // tm, n_pad // tn),
            in_specs=[
                pl.BlockSpec((1, tm, f_out), lambda hh, qi, ki: (hh, qi, 0)),   # h, query rows
                pl.BlockSpec((1, tn, f_out), lambda hh, qi, ki: (hh, ki, 0)),   # h, key rows
                pl.BlockSpec((1, 1, tn),     lambda hh, qi, ki: (hh, 0, ki)),   # v row (lane-major)
                pl.BlockSpec((tm, tn),       lambda hh, qi, ki: (qi, ki)),      # adj int8 mask
                pl.BlockSpec((1, 1, f_out),  lambda hh, qi, ki: (hh, 0, 0)),    # a_src
            ],
            out_specs=pl.BlockSpec((1, tm, f_out), lambda hh, qi, ki: (hh, qi, 0)),
            scratch_shapes=[pltpu.VMEM((tm, 1), jnp.float32),       # running max
                            pltpu.VMEM((tm, 1), jnp.float32),       # running sum
                            pltpu.VMEM((tm, f_out), jnp.float32)]), # accumulator
        compiler_params=pltpu.CompilerParams(
            dimension_semantics=("parallel", "parallel", "arbitrary"),
            vmem_limit_bytes=_VMEM_LIMIT),
    )(h, h, v, adj_i8, a_src)
    return out


def gat_forward(x, adj, params, *, alpha=0.2, tm=128, tn=128):
    """GAT.forward (eval): dropout=identity -> heads(concat) -> out_att -> ELU -> log_softmax."""
    # TODO(synk): training-mode dropout and the use_sparse=True torch.sparse.mm path are not
    # implemented (eval mode / dense attention only).
    n = x.shape[0]
    blk = math.lcm(tm, tn)
    n_pad = ((n + blk - 1) // blk) * blk

    # Pad nodes to the tile size; padded adj rows/cols are zero so padded nodes are masked
    # out of every real row's softmax and the padded outputs are simply sliced off.
    x_p = jnp.zeros((n_pad, x.shape[1]), jnp.float32).at[:n].set(x.astype(jnp.float32))
    adj_i8 = jnp.zeros((n_pad, n_pad), jnp.int8).at[:n, :n].set((adj > 0).astype(jnp.int8))

    # --- multi-head hidden layer (concat=True: ELU, no log_softmax), all heads fused ---
    w_stack = jnp.stack([w for (w, _) in params["attentions"]])          # (H, F_in, nhid)
    a_stack = jnp.stack([a[:, 0] for (_, a) in params["attentions"]])    # (H, 2*nhid)
    nhid = w_stack.shape[-1]
    a_src = a_stack[:, None, :nhid]                                      # (H, 1, nhid)
    a_dst = a_stack[:, None, nhid:]                                      # (H, 1, nhid)
    heads_out = gat_layer_heads(x_p, adj_i8, w_stack, a_src, a_dst,
                                alpha=alpha, apply_elu=True,
                                apply_log_softmax=False, tm=tm, tn=tn)   # (H, N_pad, nhid)
    # torch.cat(..., dim=1): head-major column blocks (pure reshape when H == 1).
    h_cat = jnp.transpose(heads_out, (1, 0, 2)).reshape(n_pad, -1)

    # --- output layer (concat=False) + GAT-level ELU + log_softmax fused into the kernel ---
    w_out, a_out = params["out_att"]
    nclass = w_out.shape[1]
    out = gat_layer_heads(h_cat, adj_i8, w_out[None],
                          a_out[:nclass, 0][None, None, :],
                          a_out[nclass:, 0][None, None, :],
                          alpha=alpha, apply_elu=True,
                          apply_log_softmax=True, tm=tm, tn=tn)          # (1, N_pad, nclass)
    return out[0, :n]


def _xavier_uniform(key, shape, gain=1.414):
    fan_in, fan_out = shape[0], shape[1]
    limit = gain * math.sqrt(6.0 / (fan_in + fan_out))
    return jax.random.uniform(key, shape, jnp.float32, -limit, limit)


def init_gat_params(key, nfeat, nhid, nclass, nheads=1):
    params = {"attentions": [], "out_att": None}
    for _ in range(nheads):
        key, k1, k2 = jax.random.split(key, 3)
        W = _xavier_uniform(k1, (nfeat, nhid))
        a = _xavier_uniform(k2, (2 * nhid, 1))
        params["attentions"].append((W, a))
    key, k1, k2 = jax.random.split(key, 3)
    W_out = _xavier_uniform(k1, (nhid * nheads, nclass))
    a_out = _xavier_uniform(k2, (2 * nclass, 1))
    params["out_att"] = (W_out, a_out)
    return params


if __name__ == "__main__":
    # Small deterministic problem: N=16 nodes, nfeat=16, nhid=32, nclass=8, nheads=2.
    N, nfeat, nhid, nclass, nheads = 16, 16, 32, 8, 2
    key = jax.random.PRNGKey(0)
    k_x, k_adj, k_p = jax.random.split(key, 3)

    x = jax.random.normal(k_x, (N, nfeat), jnp.float32)
    adj = jax.random.bernoulli(k_adj, 0.3, (N, N)).astype(jnp.float32)
    adj = jnp.maximum(adj, jnp.eye(N, dtype=jnp.float32))  # self-loops: every row has a neighbor

    params = init_gat_params(k_p, nfeat, nhid, nclass, nheads=nheads)

    out = gat_forward(x, adj, params, alpha=0.2)
    out = jax.block_until_ready(out)

    assert out.shape == (N, nclass)
    assert bool(jnp.all(jnp.isfinite(out)))
    # log_softmax sanity: each row's exp sums to ~1
    row_sums = jnp.sum(jnp.exp(out), axis=1)
    assert bool(jnp.all(jnp.abs(row_sums - 1.0) < 1e-3))

    print("KERNEL_OK")
</pallas_src>

<mosaic_0001>
module attributes {stable_mosaic.version = 11 : i64} {
  func.func @_project_kernel(%arg0: i32, %arg1: i32, %arg2: memref<128x16xf32, #tpu.memory_space<vmem>>, %arg3: memref<1x16x32xf32, #tpu.memory_space<vmem>>, %arg4: memref<1x1x32xf32, #tpu.memory_space<vmem>>, %arg5: memref<1x128x32xf32, #tpu.memory_space<vmem>>, %arg6: memref<1x1x128xf32, #tpu.memory_space<vmem>>) attributes {dimension_semantics = [#tpu.dimension_semantics<parallel>, #tpu.dimension_semantics<parallel>], iteration_bounds = array<i64: 2, 1>, scalar_prefetch = 0 : i64, scratch_operands = 0 : i64, tpu.core_type = #tpu.core_type<tc>, window_params = [{transform_indices = @transform_0, window_bounds = array<i64: 128, 16>}, {transform_indices = @transform_1, window_bounds = array<i64: 1, 16, 32>}, {transform_indices = @transform_2, window_bounds = array<i64: 1, 1, 32>}, {transform_indices = @transform_3, window_bounds = array<i64: 1, 128, 32>}, {transform_indices = @transform_4, window_bounds = array<i64: 1, 1, 128>}]} {
    %c0 = arith.constant 0 : index
    %c0_0 = arith.constant 0 : index
    %0 = vector.load %arg2[%c0, %c0_0] : memref<128x16xf32, #tpu.memory_space<vmem>>, vector<128x16xf32>
    %1 = arith.truncf %0 : vector<128x16xf32> to vector<128x16xbf16>
    %c0_1 = arith.constant 0 : index
    %c0_2 = arith.constant 0 : index
    %c0_3 = arith.constant 0 : index
    %2 = vector.load %arg3[%c0_1, %c0_2, %c0_3] : memref<1x16x32xf32, #tpu.memory_space<vmem>>, vector<1x16x32xf32>
    %3 = vector.shape_cast %2 : vector<1x16x32xf32> to vector<16x32xf32>
    %4 = arith.truncf %3 : vector<16x32xf32> to vector<16x32xbf16>
    %cst = arith.constant dense<0.000000e+00> : vector<128x32xf32>
    %5 = tpu.matmul %1, %4, %cst {dimension_numbers = #tpu.dot_dimension_numbers<[1], [0], [0], [1], [0, 0, 1, 1], [], []>} : vector<128x16xbf16>, vector<16x32xbf16>, vector<128x32xf32> -> vector<128x32xf32>
    %c0_4 = arith.constant 0 : index
    %c0_5 = arith.constant 0 : index
    %c0_6 = arith.constant 0 : index
    %6 = vector.load %arg5[%c0_4, %c0_5, %c0_6] : memref<1x128x32xf32, #tpu.memory_space<vmem>>, vector<1x128x32xf32>
    %7 = vector.shape_cast %6 : vector<1x128x32xf32> to vector<128x32xf32>
    %8 = vector.shape_cast %5 : vector<128x32xf32> to vector<1x128x32xf32>
    tpu.vector_store %arg5[%c0_4, %c0_5, %c0_6], %8 {strides = array<i32>} : memref<1x128x32xf32, #tpu.memory_space<vmem>>, vector<1x128x32xf32>,
    %c0_7 = arith.constant 0 : index
    %c0_8 = arith.constant 0 : index
    %c0_9 = arith.constant 0 : index
    %9 = vector.load %arg4[%c0_7, %c0_8, %c0_9] : memref<1x1x32xf32, #tpu.memory_space<vmem>>, vector<1x1x32xf32>
    %10 = vector.shape_cast %9 : vector<1x1x32xf32> to vector<1x32xf32>
    %11 = vector.broadcast %10 : vector<1x32xf32> to vector<128x32xf32>
    %12 = arith.mulf %5, %11 : vector<128x32xf32>
    %cst_10 = arith.constant dense<0.000000e+00> : vector<128xf32>
    %13 = vector.multi_reduction <add>, %12, %cst_10 [1] : vector<128x32xf32> to vector<128xf32>
    %14 = vector.shape_cast %13 : vector<128xf32> to vector<1x1x128xf32>
    %c0_11 = arith.constant 0 : index
    %c0_12 = arith.constant 0 : index
    %c0_13 = arith.constant 0 : index
    %15 = vector.load %arg6[%c0_11, %c0_12, %c0_13] : memref<1x1x128xf32, #tpu.memory_space<vmem>>, vector<1x1x128xf32>
    tpu.vector_store %arg6[%c0_11, %c0_12, %c0_13], %14 {strides = array<i32>} : memref<1x1x128xf32, #tpu.memory_space<vmem>>, vector<1x1x128xf32>,
    return
  }
  func.func @transform_0(%arg0: i32, %arg1: i32) -> (i32, i32) {
    %c0_i32 = arith.constant 0 : i32
    %c0_i32_0 = arith.constant 0 : i32
    return %arg1, %c0_i32 : i32, i32
  }
  func.func @transform_1(%arg0: i32, %arg1: i32) -> (i32, i32, i32) {
    %c0_i32 = arith.constant 0 : i32
    %c0_i32_0 = arith.constant 0 : i32
    %c0_i32_1 = arith.constant 0 : i32
    return %arg0, %c0_i32, %c0_i32_0 : i32, i32, i32
  }
  func.func @transform_2(%arg0: i32, %arg1: i32) -> (i32, i32, i32) {
    %c0_i32 = arith.constant 0 : i32
    %c0_i32_0 = arith.constant 0 : i32
    %c0_i32_1 = arith.constant 0 : i32
    return %arg0, %c0_i32, %c0_i32_0 : i32, i32, i32
  }
  func.func @transform_3(%arg0: i32, %arg1: i32) -> (i32, i32, i32) {
    %c0_i32 = arith.constant 0 : i32
    %c0_i32_0 = arith.constant 0 : i32
    return %arg0, %arg1, %c0_i32 : i32, i32, i32
  }
  func.func @transform_4(%arg0: i32, %arg1: i32) -> (i32, i32, i32) {
    %c0_i32 = arith.constant 0 : i32
    %c0_i32_0 = arith.constant 0 : i32
    return %arg0, %c0_i32, %arg1 : i32, i32, i32
  }
}

</mosaic_0001>

<llo_original>
// kernel: tpu_custom_call.1
$region0: #{tpu_custom_call.1}
  #allocation0 [shape = 'u32[]', space=smem, size = 0x4, offset = 0x4, fixed_abs, tag = 'smem constant byte address 0x4 - core index']
  #allocation1 [shape = 'u32[144,128]{1,0:T(1,128)}', space=vmem, size = 0x12000, scoped, tag = 'internal scratch']
  %s0 = inlined_call_operand.vmem [shape: f32[128,16], index: 0, kind: input, shape index: {}]
  %s1 = inlined_call_operand.vmem [shape: f32[2,16,32], index: 1, kind: input, shape index: {}]
  %s2 = inlined_call_operand.vmem [shape: f32[2,1,32], index: 2, kind: input, shape index: {}]
  %s3 = inlined_call_operand.vmem [shape: f32[2,128,32], index: 3, kind: output, shape index: {0}]
  %s4 = inlined_call_operand.hbm [shape: f32[2,1,128], index: 4, kind: output, shape index: {1}]
  %5 = xla_tuple %s3, %s4
  %s6 = sld [smem:[#allocation0]]
  $region53: #{tpu_custom_call.1} parent=0
    _
  %s8 = ssub.s32 1, %s6
  %s9 = scalar_select 0, %s8, %s6
  $region1: #{tpu_custom_call.1} parent=0
    #allocation2 [shape = 'u8[1024]{0}', space=vmem, size = 0x400, scoped, tag = 'output window, operand 1']
    #allocation3 [shape = 's32[2]{0}', space=sflag, size = 0x8, scoped, tag = 'scoped memory for tpu_custom_call.1']
    %10 = vsyncpa [#allocation3], 0
    %s11 = scalar_lea.sflag [#allocation3], 1
    %12 = vsyncpa %s11, 0
    loop: start=0, step=1, limit=4
    $region2: #{tpu_custom_call.1} parent=1 // loop_pre_header
      _
    $region3: #{tpu_custom_call.1} parent=1 // loop_header
      %s14 = sphi 0, %s18
      %p15 = scmp.ge.s32.totalorder %s14, 4
      %s21 = sphi 0, %s33
      %s22 = sphi 0, %s29
      %s23 = sphi 0, %s21
      %s24 = sphi 0, %s22
      %s25 = sphi 0, %s23
      %s26 = sphi 0, %s24
      %s36 = sphi 0, %s38
      %s39 = sphi 0, %s36
      %s40 = sphi 0, %s39
      %s56 = sphi 0, %s40
      %s62 = sphi 0, %s64
      %s65 = sphi 0, %s62
      %s66 = sphi 0, %s65
      %s82 = sphi 0, %s66
      %s88 = sphi 0, %s90
      %s91 = sphi 0, %s88
      %s92 = sphi 0, %s91
      %s108 = sphi 0, %s92
      %s116 = sphi 0, %s118
      %s119 = sphi 0, %s116
      %s120 = sphi 0, %s119
      %s136 = sphi 0, %s120
      %s144 = sphi 0, %s146
      %s147 = sphi 0, %s144
      %s148 = sphi 0, %s147
      %s164 = sphi 0, %s148
    $region4: #{tpu_custom_call.1} parent=1 // loop_header_branch
      %17 = sbr.rel (%p15) target = $region8
    $region5: #{tpu_custom_call.1} parent=1 // loop_body
      %s19 = ssub.s32 %s14, 1
      %s20 = ssub.s32 %s14, 2
      %s27 = sadd.s32 1, %s22
      %p28 = scmp.ge.s32.totalorder %s27, 1
      %s29 = scalar_select %p28, 0, %s27
      %s30 = sadd.s32 1, %s21
      %s31 = scalar_select %p28, %s30, %s21
      %p32 = scmp.ge.s32.totalorder %s31, 2
      %s33 = scalar_select %p32, 0, %s31
      %s34 = ssub.s32 %s22, %s29
      %p35 = scmp.eq.s32.totalorder %s34, 0
      %s37 = sadd.s32 %s36, 1
      %s38 = scalar_select %p35, %s36, %s37
      %p41 = pneg %p35
      %p42 = scmp.eq.s32.totalorder %s14, 1
      %p43 = por %p41, %p42
      %p44 = scmp.ne.s32.totalorder %s36, %s39
      %p45 = scmp.eq.s32.totalorder %s14, 0
      %p46 = por %p44, %p45
      %p47 = scmp.ne.s32.totalorder %s36, %s39
      %p48 = scmp.eq.s32.totalorder %s19, 1
      %p49 = por %p47, %p48
      %p50 = scmp.ne.s32.totalorder %s39, %s40
      %p51 = scmp.eq.s32.totalorder %s19, 0
      %p52 = por %p50, %p51
      %p53 = scmp.ne.s32.totalorder %s39, %s40
      %p54 = scmp.eq.s32.totalorder %s20, 1
      %p55 = por %p53, %p54
      %p57 = scmp.ne.s32.totalorder %s40, %s56
      %p58 = scmp.eq.s32.totalorder %s20, 0
      %p59 = por %p57, %p58
      %s60 = ssub.s32 %s21, %s33
      %p61 = scmp.eq.s32.totalorder %s60, 0
      %s63 = sadd.s32 %s62, 1
      %s64 = scalar_select %p61, %s62, %s63
      %p67 = pneg %p61
      %p68 = scmp.eq.s32.totalorder %s14, 1
      %p69 = por %p67, %p68
      %p70 = scmp.ne.s32.totalorder %s62, %s65
      %p71 = scmp.eq.s32.totalorder %s14, 0
      %p72 = por %p70, %p71
      %p73 = scmp.ne.s32.totalorder %s62, %s65
      %p74 = scmp.eq.s32.totalorder %s19, 1
      %p75 = por %p73, %p74
      %p76 = scmp.ne.s32.totalorder %s65, %s66
      %p77 = scmp.eq.s32.totalorder %s19, 0
      %p78 = por %p76, %p77
      %p79 = scmp.ne.s32.totalorder %s65, %s66
      %p80 = scmp.eq.s32.totalorder %s20, 1
      %p81 = por %p79, %p80
      %p83 = scmp.ne.s32.totalorder %s66, %s82
      %p84 = scmp.eq.s32.totalorder %s20, 0
      %p85 = por %p83, %p84
      %s86 = ssub.s32 %s21, %s33
      %p87 = scmp.eq.s32.totalorder %s86, 0
      %s89 = sadd.s32 %s88, 1
      %s90 = scalar_select %p87, %s88, %s89
      %p93 = pneg %p87
      %p94 = scmp.eq.s32.totalorder %s14, 1
      %p95 = por %p93, %p94
      %p96 = scmp.ne.s32.totalorder %s88, %s91
      %p97 = scmp.eq.s32.totalorder %s14, 0
      %p98 = por %p96, %p97
      %p99 = scmp.ne.s32.totalorder %s88, %s91
      %p100 = scmp.eq.s32.totalorder %s19, 1
      %p101 = por %p99, %p100
      %p102 = scmp.ne.s32.totalorder %s91, %s92
      %p103 = scmp.eq.s32.totalorder %s19, 0
      %p104 = por %p102, %p103
      %p105 = scmp.ne.s32.totalorder %s91, %s92
      %p106 = scmp.eq.s32.totalorder %s20, 1
      %p107 = por %p105, %p106
      %p109 = scmp.ne.s32.totalorder %s92, %s108
      %p110 = scmp.eq.s32.totalorder %s20, 0
      %p111 = por %p109, %p110
      %s112 = ssub.s32 %s21, %s33
      %s113 = ssub.s32 %s22, %s29
      %s114 = sor.u32 %s112, %s113
      %p115 = scmp.eq.s32.totalorder %s114, 0
      %s117 = sadd.s32 %s116, 1
      %s118 = scalar_select %p115, %s116, %s117
      %p121 = pneg %p115
      %p122 = scmp.eq.s32.totalorder %s14, 1
      %p123 = por %p121, %p122
      %p124 = scmp.ne.s32.totalorder %s116, %s119
      %p125 = scmp.eq.s32.totalorder %s14, 0
      %p126 = por %p124, %p125
      %p127 = scmp.ne.s32.totalorder %s116, %s119
      %p128 = scmp.eq.s32.totalorder %s19, 1
      %p129 = por %p127, %p128
      %p130 = scmp.ne.s32.totalorder %s119, %s120
      %p131 = scmp.eq.s32.totalorder %s19, 0
      %p132 = por %p130, %p131
      %p133 = scmp.ne.s32.totalorder %s119, %s120
      %p134 = scmp.eq.s32.totalorder %s20, 1
      %p135 = por %p133, %p134
      %p137 = scmp.ne.s32.totalorder %s120, %s136
      %p138 = scmp.eq.s32.totalorder %s20, 0
      %p139 = por %p137, %p138
      %s140 = ssub.s32 %s21, %s33
      %s141 = ssub.s32 %s22, %s29
      %s142 = sor.u32 %s140, %s141
      %p143 = scmp.eq.s32.totalorder %s142, 0
      %s145 = sadd.s32 %s144, 1
      %s146 = scalar_select %p143, %s144, %s145
      %p149 = pneg %p143
      %p150 = scmp.eq.s32.totalorder %s14, 1
      %p151 = por %p149, %p150
      %p152 = scmp.ne.s32.totalorder %s144, %s147
      %p153 = scmp.eq.s32.totalorder %s14, 0
      %p154 = por %p152, %p153
      %p155 = scmp.ne.s32.totalorder %s144, %s147
      %p156 = scmp.eq.s32.totalorder %s19, 1
      %p157 = por %p155, %p156
      %p158 = scmp.ne.s32.totalorder %s147, %s148
      %p159 = scmp.eq.s32.totalorder %s19, 0
      %p160 = por %p158, %p159
      %p161 = scmp.ne.s32.totalorder %s147, %s148
      %p162 = scmp.eq.s32.totalorder %s20, 1
      %p163 = por %p161, %p162
      %p165 = scmp.ne.s32.totalorder %s148, %s164
      %p166 = scmp.eq.s32.totalorder %s20, 0
      %p167 = por %p165, %p166
      %p168 = scmp.le.s32.totalorder 1, %s14
      %p169 = scmp.lt.s32.totalorder %s14, 3
      %p170 = pnand %p168, %p169
      %p171 = pneg %p170
      // Predicated region
      $region9: #{tpu_custom_call.1} parent=5 // pred_check
        _
      $region10: #{tpu_custom_call.1} parent=5 // pred_check_branch
        %173 = sbr.rel (%p170) target = $region12
      $region11: #{tpu_custom_call.1} parent=5 // pred_region
        %s174 = ssub.s32 %s14, 1
        // Predicated region
        $region13: #{tpu_custom_call.1} parent=11 // pred_check
          %p175 = pneg %p52
        $region14: #{tpu_custom_call.1} parent=11 // pred_check_branch
          %177 = sbr.rel (%p175) target = $region16
        $region15: #{tpu_custom_call.1} parent=11 // pred_region
          %s178 = smul.u32 16, %s24
          %p179 = scmp.lt.s32.totalorder %s178, 15
          %s180 = scalar_select %p179, %s178, 15
          %s181 = smul.addr %s180, 8
          %s182 = scalar_lea.vmem %s0, %s181
          %s183 = smul.u32 16, %s24
        $region16: #{tpu_custom_call.1} parent=11 // pred_fallthru
          _
      $region12: #{tpu_custom_call.1} parent=5 // pred_fallthru
        _
      %p184 = scmp.lt.s32.totalorder %s14, 2
      // Predicated region
      $region17: #{tpu_custom_call.1} parent=5 // pred_check
        %p185 = pneg %p184
      $region18: #{tpu_custom_call.1} parent=5 // pred_check_branch
        %187 = sbr.rel (%p185) target = $region20
      $region19: #{tpu_custom_call.1} parent=5 // pred_region
        // Predicated region
        $region21: #{tpu_custom_call.1} parent=19 // pred_check
          %p188 = pneg %p72
        $region22: #{tpu_custom_call.1} parent=19 // pred_check_branch
          %190 = sbr.rel (%p188) target = $region24
        $region23: #{tpu_custom_call.1} parent=19 // pred_region
          %p191 = scmp.lt.s32.totalorder %s21, 1
          %s192 = scalar_select %p191, %s21, 1
          %s193 = smul.addr %s192, 2
          %s194 = smul.addr %s193, 8
          %s195 = scalar_lea.vmem %s1, %s194
        $region24: #{tpu_custom_call.1} parent=19 // pred_fallthru
          _
        // Predicated region
        $region25: #{tpu_custom_call.1} parent=19 // pred_check
          %p196 = pneg %p98
        $region26: #{tpu_custom_call.1} parent=19 // pred_check_branch
          %198 = sbr.rel (%p196) target = $region28
        $region27: #{tpu_custom_call.1} parent=19 // pred_region
          %p199 = scmp.lt.s32.totalorder %s21, 1
          %s200 = scalar_select %p199, %s21, 1
          %s201 = scalar_lea.vmem %s2, %s200
        $region28: #{tpu_custom_call.1} parent=19 // pred_fallthru
          _
      $region20: #{tpu_custom_call.1} parent=5 // pred_fallthru
        _
      %p202 = scmp.le.s32.totalorder 1, %s14
      %p203 = scmp.lt.s32.totalorder %s14, 3
      %p204 = pnand %p202, %p203
      %p205 = pneg %p204
      // Predicated region
      $region29: #{tpu_custom_call.1} parent=5 // pred_check
        _
      $region30: #{tpu_custom_call.1} parent=5 // pred_check_branch
        %207 = sbr.rel (%p204) target = $region32
      $region31: #{tpu_custom_call.1} parent=5 // pred_region
        %s208 = ssub.s32 %s14, 1
        %s209 = smul.u32 16, %s24
        %p210 = scmp.lt.s32.totalorder %s209, 15
        %s211 = scalar_select %p210, %s209, 15
        %s212 = smul.addr %s211, 8
        %s213 = scalar_lea.vmem %s0, %s212
        %p214 = pneg %p52
        %p215 = pneg %p49
        %p216 = scmp.lt.s32.totalorder %s23, 1
        %s217 = scalar_select %p216, %s23, 1
        %s218 = smul.addr %s217, 2
        %s219 = smul.addr %s218, 8
        %s220 = scalar_lea.vmem %s1, %s219
        %p221 = pneg %p78
        %p222 = pneg %p75
        %p223 = scmp.lt.s32.totalorder %s23, 1
        %s224 = scalar_select %p223, %s23, 1
        %s225 = scalar_lea.vmem %s2, %s224
        %p226 = pneg %p104
        %p227 = pneg %p101
        %p228 = pneg %p132
        %p229 = pneg %p129
        %s230 = smul.u32 16, %s24
        %p231 = scmp.lt.s32.totalorder %s23, 1
        %s232 = scalar_select %p231, %s23, 1
        %p233 = scmp.lt.s32.totalorder %s230, 15
        %s234 = scalar_select %p233, %s230, 15
        %s235 = smul.addr %s232, 16
        %s236 = sadd.s32 %s234, %s235
        %s237 = smul.addr %s236, 8
        %s238 = scalar_lea.vmem %s3, %s237
        %p239 = pneg %p160
        %p240 = pneg %p157
        %s241 = sand.u32 %s147, 1
        %s242 = scalar_lea.sflag [#allocation3], %s241
        %s243 = sand.u32 %s147, 1
        %s244 = scalar_lea.vmem [#allocation2], %s243
        %s245 = smul.u32 16, %s24
        %p246 = scmp.lt.s32.totalorder %s245, 15
        %s247 = scalar_select %p246, %s245, 15
        %s248 = smul.addr %s247, 8
        %s249 = scalar_lea.vmem %s0, %s248
        %s250 = smul.u32 16, %s24
        %p251 = scmp.lt.s32.totalorder %s23, 1
        %s252 = scalar_select %p251, %s23, 1
        %s253 = smul.addr %s252, 2
        %s254 = smul.addr %s253, 8
        %s255 = scalar_lea.vmem %s1, %s254
        %p256 = scmp.lt.s32.totalorder %s23, 1
        %s257 = scalar_select %p256, %s23, 1
        %s258 = scalar_lea.vmem %s2, %s257
        %s259 = smul.u32 16, %s24
        %p260 = scmp.lt.s32.totalorder %s23, 1
        %s261 = scalar_select %p260, %s23, 1
        %p262 = scmp.lt.s32.totalorder %s259, 15
        %s263 = scalar_select %p262, %s259, 15
        %s264 = smul.addr %s261, 16
        %s265 = sadd.s32 %s263, %s264
        %s266 = smul.addr %s265, 8
        %s267 = scalar_lea.vmem %s3, %s266
        %s268 = smul.u32 16, %s24
        %v270 = vld [vmem:[%s249] sm:$0xff]
        %v271 = vld [vmem:[%s249 + $0x8] sm:$0xff]
        %v272 = vld [vmem:[%s249 + $0x10] sm:$0xff]
        %v273 = vld [vmem:[%s249 + $0x18] sm:$0xff]
        %v274 = vld [vmem:[%s249 + $0x20] sm:$0xff]
        %v275 = vld [vmem:[%s249 + $0x28] sm:$0xff]
        %v276 = vld [vmem:[%s249 + $0x30] sm:$0xff]
        %v277 = vld [vmem:[%s249 + $0x38] sm:$0xff]
        %v278 = vld [vmem:[%s249 + $0x40] sm:$0xff]
        %v279 = vld [vmem:[%s249 + $0x48] sm:$0xff]
        %v280 = vld [vmem:[%s249 + $0x50] sm:$0xff]
        %v281 = vld [vmem:[%s249 + $0x58] sm:$0xff]
        %v282 = vld [vmem:[%s249 + $0x60] sm:$0xff]
        %v283 = vld [vmem:[%s249 + $0x68] sm:$0xff]
        %v284 = vld [vmem:[%s249 + $0x70] sm:$0xff]
        %v285 = vld [vmem:[%s249 + $0x78] sm:$0xff]
        %v286 = vpack.c.bf16 %v271, %v270
        %v287 = vpack.c.bf16 %v273, %v272
        %v288 = vpack.c.bf16 %v275, %v274
        %v289 = vpack.c.bf16 %v277, %v276
        %v290 = vpack.c.bf16 %v279, %v278
        %v291 = vpack.c.bf16 %v281, %v280
        %v292 = vpack.c.bf16 %v283, %v282
        %v293 = vpack.c.bf16 %v285, %v284
        %v294 = vld [vmem:[%s255] sm:$0xff]
        %v295 = vld [vmem:[%s255 + $0x8] sm:$0xff]
        %v296 = vpack.c.bf16 %v295, %v294
        %vm297 = vcmask 130048
        %v299 = vsel %vm297, %v286, 0
        %v302 = vsel %vm297, %v287, 0
        %v305 = vsel %vm297, %v288, 0
        %v308 = vsel %vm297, %v289, 0
        %v311 = vsel %vm297, %v290, 0
        %v314 = vsel %vm297, %v291, 0
        %v317 = vsel %vm297, %v292, 0
        %v320 = vsel %vm297, %v293, 0
        %322 = vmatprep.subr.bf16.mxu0 0
        %323 = vmatpush1.bf16.msra.mxu0 %v296
        %324 = vmatprep.subr.bf16.mxu0 0
        %325 = vmatpush1.bf16.msra.mxu0 0
        %326 = vmatprep.subr.bf16.mxu0 0
        %327 = vmatpush1.bf16.msra.mxu0 0
        %328 = vmatprep.subr.bf16.mxu0 0
        %329 = vmatpush1.bf16.msra.mxu0 0
        %330 = vmatprep.subr.bf16.mxu0 0
        %331 = vmatpush1.bf16.msra.mxu0 0
        %332 = vmatprep.subr.bf16.mxu0 0
        %333 = vmatpush1.bf16.msra.mxu0 0
        %334 = vmatprep.subr.bf16.mxu0 0
        %335 = vmatpush1.bf16.msra.mxu0 0
        %336 = vmatprep.subr.bf16.mxu0 0
        %337 = vmatpush1.bf16.msra.mxu0 0
        %338 = vmatprep.subr.bf16.mxu0 0
        %339 = vmatpush1.bf16.msra.mxu0 0
        %340 = vmatprep.subr.bf16.mxu0 0
        %341 = vmatpush1.bf16.msra.mxu0 0
        %342 = vmatprep.subr.bf16.mxu0 0
        %343 = vmatpush1.bf16.msra.mxu0 0
        %344 = vmatprep.subr.bf16.mxu0 0
        %345 = vmatpush1.bf16.msra.mxu0 0
        %346 = vmatprep.subr.bf16.mxu0 0
        %347 = vmatpush1.bf16.msra.mxu0 0
        %348 = vmatprep.subr.bf16.mxu0 0
        %349 = vmatpush1.bf16.msra.mxu0 0
        %350 = vmatprep.subr.bf16.mxu0 0
        %351 = vmatpush1.bf16.msra.mxu0 0
        %352 = vmatprep.subr.bf16.mxu0 0
        %353 = vmatpush1.bf16.msra.mxu0 0
        %354 = vmatprep.mubr.bf16.mxu0 0
        %355 = vmatmul.mubr.bf16.gmra.mrb[0].mxu0 %v299
        %v356 = vpop.f32.mrb[0].mxu0
        %v357 = vadd.f32 0.0, %v356
        %v358 = vpop.f32.mrb[0].mxu0
        %v359 = vpop.f32.mrb[0].mxu0
        %v360 = vadd.f32 0.0, %v359
        %v361 = vpop.f32.mrb[0].mxu0
        %362 = vmatprep.mubr.bf16.mxu0 0
        %363 = vmatmul.mubr.bf16.gmra.mrb[0].mxu0 %v302
        %v364 = vpop.f32.mrb[0].mxu0
        %v365 = vadd.f32 0.0, %v364
        %v366 = vpop.f32.mrb[0].mxu0
        %v367 = vpop.f32.mrb[0].mxu0
        %v368 = vadd.f32 0.0, %v367
        %v369 = vpop.f32.mrb[0].mxu0
        %370 = vmatprep.mubr.bf16.mxu0 0
        %371 = vmatmul.mubr.bf16.gmra.mrb[0].mxu0 %v305
        %v372 = vpop.f32.mrb[0].mxu0
        %v373 = vadd.f32 0.0, %v372
        %v374 = vpop.f32.mrb[0].mxu0
        %v375 = vpop.f32.mrb[0].mxu0
        %v376 = vadd.f32 0.0, %v375
        %v377 = vpop.f32.mrb[0].mxu0
        %378 = vmatprep.mubr.bf16.mxu0 0
        %379 = vmatmul.mubr.bf16.gmra.mrb[0].mxu0 %v308
        %v380 = vpop.f32.mrb[0].mxu0
        %v381 = vadd.f32 0.0, %v380
        %v382 = vpop.f32.mrb[0].mxu0
        %v383 = vpop.f32.mrb[0].mxu0
        %v384 = vadd.f32 0.0, %v383
        %v385 = vpop.f32.mrb[0].mxu0
        %386 = vmatprep.mubr.bf16.mxu0 0
        %387 = vmatmul.mubr.bf16.gmra.mrb[0].mxu0 %v311
        %v388 = vpop.f32.mrb[0].mxu0
        %v389 = vadd.f32 0.0, %v388
        %v390 = vpop.f32.mrb[0].mxu0
        %v391 = vpop.f32.mrb[0].mxu0
        %v392 = vadd.f32 0.0, %v391
        %v393 = vpop.f32.mrb[0].mxu0
        %394 = vmatprep.mubr.bf16.mxu0 0
        %395 = vmatmul.mubr.bf16.gmra.mrb[0].mxu0 %v314
        %v396 = vpop.f32.mrb[0].mxu0
        %v397 = vadd.f32 0.0, %v396
        %v398 = vpop.f32.mrb[0].mxu0
        %v399 = vpop.f32.mrb[0].mxu0
        %v400 = vadd.f32 0.0, %v399
        %v401 = vpop.f32.mrb[0].mxu0
        %402 = vmatprep.mubr.bf16.mxu0 0
        %403 = vmatmul.mubr.bf16.gmra.mrb[0].mxu0 %v317
        %v404 = vpop.f32.mrb[0].mxu0
        %v405 = vadd.f32 0.0, %v404
        %v406 = vpop.f32.mrb[0].mxu0
        %v407 = vpop.f32.mrb[0].mxu0
        %v408 = vadd.f32 0.0, %v407
        %v409 = vpop.f32.mrb[0].mxu0
        %410 = vmatprep.mubr.bf16.mxu0 0
        %411 = vmatmul.mubr.bf16.gmra.mrb[0].mxu0 %v320
        %v412 = vpop.f32.mrb[0].mxu0
        %v413 = vadd.f32 0.0, %v412
        %v414 = vpop.f32.mrb[0].mxu0
        %v415 = vpop.f32.mrb[0].mxu0
        %v416 = vadd.f32 0.0, %v415
        %v417 = vpop.f32.mrb[0].mxu0
        %418 = vdwg.mxu0
        %vm419 = vcmask 261120
        %420 = vst.msk [vmem:[%s267] sm:$0xff] %vm419, %v357
        %421 = vst.msk [vmem:[%s267 + $0x8] sm:$0xff] %vm419, %v360
        %422 = vst.msk [vmem:[%s267 + $0x10] sm:$0xff] %vm419, %v365
        %423 = vst.msk [vmem:[%s267 + $0x18] sm:$0xff] %vm419, %v368
        %424 = vst.msk [vmem:[%s267 + $0x20] sm:$0xff] %vm419, %v373
        %425 = vst.msk [vmem:[%s267 + $0x28] sm:$0xff] %vm419, %v376
        %426 = vst.msk [vmem:[%s267 + $0x30] sm:$0xff] %vm419, %v381
        %427 = vst.msk [vmem:[%s267 + $0x38] sm:$0xff] %vm419, %v384
        %428 = vst.msk [vmem:[%s267 + $0x40] sm:$0xff] %vm419, %v389
        %429 = vst.msk [vmem:[%s267 + $0x48] sm:$0xff] %vm419, %v392
        %430 = vst.msk [vmem:[%s267 + $0x50] sm:$0xff] %vm419, %v397
        %431 = vst.msk [vmem:[%s267 + $0x58] sm:$0xff] %vm419, %v400
        %432 = vst.msk [vmem:[%s267 + $0x60] sm:$0xff] %vm419, %v405
        %433 = vst.msk [vmem:[%s267 + $0x68] sm:$0xff] %vm419, %v408
        %434 = vst.msk [vmem:[%s267 + $0x70] sm:$0xff] %vm419, %v413
        %435 = vst.msk [vmem:[%s267 + $0x78] sm:$0xff] %vm419, %v416
        %v436 = vld [vmem:[%s258] sm:$0x1]
        %v438 = vlaneseq
        %v439 = vshrl.u32 %v438, 7
        %v440 = vsub.s32 0, %v439
        %v441 = vrot.slane %v436, %v440
        %v443 = vmul.f32 %v357, %v441
        %v444 = vmul.f32 %v360, %v441
        %v445 = vmul.f32 %v365, %v441
        %v446 = vmul.f32 %v368, %v441
        %v447 = vmul.f32 %v373, %v441
        %v448 = vmul.f32 %v376, %v441
        %v449 = vmul.f32 %v381, %v441
        %v450 = vmul.f32 %v384, %v441
        %v451 = vmul.f32 %v389, %v441
        %v452 = vmul.f32 %v392, %v441
        %v453 = vmul.f32 %v397, %v441
        %v454 = vmul.f32 %v400, %v441
        %v455 = vmul.f32 %v405, %v441
        %v456 = vmul.f32 %v408, %v441
        %v457 = vmul.f32 %v413, %v441
        %v458 = vmul.f32 %v416, %v441
        %v459 = vsel %vm419, %v443, 0.0
        %460 = vadd.xlane.f32.xlu0 %v459
        %v461 = vpop.xlane.xlu0 %460
        %v462 = vsel %vm419, %v444, 0.0
        %463 = vadd.xlane.f32.xlu0 %v462
        %v464 = vpop.xlane.xlu0 %463
        %v465 = vsel %vm419, %v445, 0.0
        %466 = vadd.xlane.f32.xlu0 %v465
        %v467 = vpop.xlane.xlu0 %466
        %v468 = vsel %vm419, %v446, 0.0
        %469 = vadd.xlane.f32.xlu0 %v468
        %v470 = vpop.xlane.xlu0 %469
        %v471 = vsel %vm419, %v447, 0.0
        %472 = vadd.xlane.f32.xlu0 %v471
        %v473 = vpop.xlane.xlu0 %472
        %v474 = vsel %vm419, %v448, 0.0
        %475 = vadd.xlane.f32.xlu0 %v474
        %v476 = vpop.xlane.xlu0 %475
        %v477 = vsel %vm419, %v449, 0.0
        %478 = vadd.xlane.f32.xlu0 %v477
        %v479 = vpop.xlane.xlu0 %478
        %v480 = vsel %vm419, %v450, 0.0
        %481 = vadd.xlane.f32.xlu0 %v480
        %v482 = vpop.xlane.xlu0 %481
        %v483 = vsel %vm419, %v451, 0.0
        %484 = vadd.xlane.f32.xlu0 %v483
        %v485 = vpop.xlane.xlu0 %484
        %v486 = vsel %vm419, %v452, 0.0
        %487 = vadd.xlane.f32.xlu0 %v486
        %v488 = vpop.xlane.xlu0 %487
        %v489 = vsel %vm419, %v453, 0.0
        %490 = vadd.xlane.f32.xlu0 %v489
        %v491 = vpop.xlane.xlu0 %490
        %v492 = vsel %vm419, %v454, 0.0
        %493 = vadd.xlane.f32.xlu0 %v492
        %v494 = vpop.xlane.xlu0 %493
        %v495 = vsel %vm419, %v455, 0.0
        %496 = vadd.xlane.f32.xlu0 %v495
        %v497 = vpop.xlane.xlu0 %496
        %v498 = vsel %vm419, %v456, 0.0
        %499 = vadd.xlane.f32.xlu0 %v498
        %v500 = vpop.xlane.xlu0 %499
        %v501 = vsel %vm419, %v457, 0.0
        %502 = vadd.xlane.f32.xlu0 %v501
        %v503 = vpop.xlane.xlu0 %502
        %v504 = vsel %vm419, %v458, 0.0
        %505 = vadd.xlane.f32.xlu0 %v504
        %v506 = vpop.xlane.xlu0 %505
        %v523 = vlaneseq
        %v524 = vand.u32 %v523, 127
        %v525 = vlaneseq
        %v526 = vshrl.u32 %v525, 7
        %v527 = vsub.s32 %v524, %v526
        %v528 = vrot.slane %v461, %v527
        %v529 = vadd.s32 %v524, 4294967288
        %v530 = vlaneseq
        %v531 = vshrl.u32 %v530, 7
        %v532 = vsub.s32 %v529, %v531
        %v533 = vrot.slane %v464, %v532
        %vm534 = vcmask 130112
        %v535 = vsel %vm534, %v533, %v528
        %v536 = vadd.s32 %v524, 4294967280
        %v537 = vlaneseq
        %v538 = vshrl.u32 %v537, 7
        %v539 = vsub.s32 %v536, %v538
        %v540 = vrot.slane %v467, %v539
        %vm541 = vcmask 195712
        %v542 = vsel %vm541, %v540, %v535
        %v543 = vadd.s32 %v524, 4294967272
        %v544 = vlaneseq
        %v545 = vshrl.u32 %v544, 7
        %v546 = vsub.s32 %v543, %v545
        %v547 = vrot.slane %v470, %v546
        %vm548 = vcmask 261312
        %v549 = vsel %vm548, %v547, %v542
        %v550 = vadd.s32 %v524, 4294967264
        %v551 = vlaneseq
        %v552 = vshrl.u32 %v551, 7
        %v553 = vsub.s32 %v550, %v552
        %v554 = vrot.slane %v473, %v553
        %vm555 = vcmask 326912
        %v556 = vsel %vm555, %v554, %v549
        %v557 = vadd.s32 %v524, 4294967256
        %v558 = vlaneseq
        %v559 = vshrl.u32 %v558, 7
        %v560 = vsub.s32 %v557, %v559
        %v561 = vrot.slane %v476, %v560
        %vm562 = vcmask 392512
        %v563 = vsel %vm562, %v561, %v556
        %v564 = vadd.s32 %v524, 4294967248
        %v565 = vlaneseq
        %v566 = vshrl.u32 %v565, 7
        %v567 = vsub.s32 %v564, %v566
        %v568 = vrot.slane %v479, %v567
        %vm569 = vcmask 458112
        %v570 = vsel %vm569, %v568, %v563
        %v571 = vadd.s32 %v524, 4294967240
        %v572 = vlaneseq
        %v573 = vshrl.u32 %v572, 7
        %v574 = vsub.s32 %v571, %v573
        %v575 = vrot.slane %v482, %v574
        %vm576 = vcmask 523712
        %v577 = vsel %vm576, %v575, %v570
        %v578 = vadd.s32 %v524, 4294967232
        %v579 = vlaneseq
        %v580 = vshrl.u32 %v579, 7
        %v581 = vsub.s32 %v578, %v580
        %v582 = vrot.slane %v485, %v581
        %vm583 = vcmask 589312
        %v584 = vsel %vm583, %v582, %v577
        %v585 = vadd.s32 %v524, 4294967224
        %v586 = vlaneseq
        %v587 = vshrl.u32 %v586, 7
        %v588 = vsub.s32 %v585, %v587
        %v589 = vrot.slane %v488, %v588
        %vm590 = vcmask 654912
        %v591 = vsel %vm590, %v589, %v584
        %v592 = vadd.s32 %v524, 4294967216
        %v593 = vlaneseq
        %v594 = vshrl.u32 %v593, 7
        %v595 = vsub.s32 %v592, %v594
        %v596 = vrot.slane %v491, %v595
        %vm597 = vcmask 720512
        %v598 = vsel %vm597, %v596, %v591
        %v599 = vadd.s32 %v524, 4294967208
        %v600 = vlaneseq
        %v601 = vshrl.u32 %v600, 7
        %v602 = vsub.s32 %v599, %v601
        %v603 = vrot.slane %v494, %v602
        %vm604 = vcmask 786112
        %v605 = vsel %vm604, %v603, %v598
        %v606 = vadd.s32 %v524, 4294967200
        %v607 = vlaneseq
        %v608 = vshrl.u32 %v607, 7
        %v609 = vsub.s32 %v606, %v608
        %v610 = vrot.slane %v497, %v609
        %vm611 = vcmask 851712
        %v612 = vsel %vm611, %v610, %v605
        %v613 = vadd.s32 %v524, 4294967192
        %v614 = vlaneseq
        %v615 = vshrl.u32 %v614, 7
        %v616 = vsub.s32 %v613, %v615
        %v617 = vrot.slane %v500, %v616
        %vm618 = vcmask 917312
        %v619 = vsel %vm618, %v617, %v612
        %v620 = vadd.s32 %v524, 4294967184
        %v621 = vlaneseq
        %v622 = vshrl.u32 %v621, 7
        %v623 = vsub.s32 %v620, %v622
        %v624 = vrot.slane %v503, %v623
        %vm625 = vcmask 982912
        %v626 = vsel %vm625, %v624, %v619
        %v627 = vadd.s32 %v524, 4294967176
        %v628 = vlaneseq
        %v629 = vshrl.u32 %v628, 7
        %v630 = vsub.s32 %v627, %v629
        %v631 = vrot.slane %v506, %v630
        %vm632 = vcmask 1048512
        %v633 = vsel %vm632, %v631, %v626
        %635 = vst [vmem:[%s244] sm:$0x1] %v633
        %s636 = smul.u32 16, %s24
        %p637 = scmp.lt.s32.totalorder %s23, 1
        %s638 = scalar_select %p637, %s23, 1
        %p639 = scmp.lt.s32.totalorder %s636, 15
        %s640 = scalar_select %p639, %s636, 15
        %s641 = smul.addr %s638, 16
        %s642 = sadd.s32 %s640, %s641
        %s643 = smul.addr %s642, 8
        %s644 = scalar_lea.vmem %s3, %s643
        %s645 = sand.u32 %s147, 1
        %s646 = scalar_lea.sflag [#allocation3], %s645
        %s647 = sand.u32 %s147, 1
        %s648 = scalar_lea.vmem [#allocation2], %s647
        // Predicated region
        $region33: #{tpu_custom_call.1} parent=31 // pred_check
          %p649 = pneg %p129
        $region34: #{tpu_custom_call.1} parent=31 // pred_check_branch
          %651 = sbr.rel (%p649) target = $region36
        $region35: #{tpu_custom_call.1} parent=31 // pred_region
          %s652 = smul.u32 16, %s24
        $region36: #{tpu_custom_call.1} parent=31 // pred_fallthru
          _
        // Predicated region
        $region37: #{tpu_custom_call.1} parent=31 // pred_check
          %p653 = pneg %p157
        $region38: #{tpu_custom_call.1} parent=31 // pred_check_branch
          %655 = sbr.rel (%p653) target = $region40
        $region39: #{tpu_custom_call.1} parent=31 // pred_region
          %s657 = ssub.s32 16, 16
          %658 = vsyncadd %s646, %s657
          %s659 = sadd.s32 %s24, %s23
          %s660 = smul.addr %s659, 16
          %s661 = scalar_lea.hbm %s4, %s660
          %s663 = sshll.u32 %s648, 4
          %s664 = int_to_ptr.vmem [resolvable:$true] %s663
          %666 = dma.vmem_to_hbm [thread:$0]  %s664, 16, %s661, %s646
        $region40: #{tpu_custom_call.1} parent=31 // pred_fallthru
          _
      $region32: #{tpu_custom_call.1} parent=5 // pred_fallthru
        _
      %p667 = scmp.le.s32.totalorder 2, %s14
      // Predicated region
      $region41: #{tpu_custom_call.1} parent=5 // pred_check
        %p668 = pneg %p667
      $region42: #{tpu_custom_call.1} parent=5 // pred_check_branch
        %670 = sbr.rel (%p668) target = $region44
      $region43: #{tpu_custom_call.1} parent=5 // pred_region
        %s671 = ssub.s32 %s14, 2
        // Predicated region
        $region45: #{tpu_custom_call.1} parent=43 // pred_check
          %p672 = pneg %p135
        $region46: #{tpu_custom_call.1} parent=43 // pred_check_branch
          %674 = sbr.rel (%p672) target = $region48
        $region47: #{tpu_custom_call.1} parent=43 // pred_region
          %s675 = smul.u32 16, %s26
          %p676 = scmp.lt.s32.totalorder %s25, 1
          %s677 = scalar_select %p676, %s25, 1
          %p678 = scmp.lt.s32.totalorder %s675, 15
          %s679 = scalar_select %p678, %s675, 15
          %s680 = smul.addr %s677, 16
          %s681 = sadd.s32 %s679, %s680
          %s682 = smul.addr %s681, 8
          %s683 = scalar_lea.vmem %s3, %s682
        $region48: #{tpu_custom_call.1} parent=43 // pred_fallthru
          _
        // Predicated region
        $region49: #{tpu_custom_call.1} parent=43 // pred_check
          %p684 = pneg %p163
        $region50: #{tpu_custom_call.1} parent=43 // pred_check_branch
          %686 = sbr.rel (%p684) target = $region52
        $region51: #{tpu_custom_call.1} parent=43 // pred_region
          %s687 = sand.u32 %s148, 1
          %s688 = scalar_lea.sflag [#allocation3], %s687
          %s689 = sand.u32 %s148, 1
          %s690 = scalar_lea.vmem [#allocation2], %s689
          %691 = dma.done %s688, 16
        $region52: #{tpu_custom_call.1} parent=43 // pred_fallthru
          _
      $region44: #{tpu_custom_call.1} parent=5 // pred_fallthru
        _
    $region6: #{tpu_custom_call.1} parent=1 // loop_footer
      %s18 = sadd.s32 1, %s14
    $region7: #{tpu_custom_call.1} parent=1 // loop_footer_branch
      %13 = sbr.rel target = $region3
    $region8: #{tpu_custom_call.1} parent=1 // loop_exit
      _
    %692 = vsyncpa [#allocation3], 1
    %s693 = scalar_lea.sflag [#allocation3], 1
    %694 = vsyncpa %s693, 1

</llo_original>
